<compile_context>
chip_gen: v5e
topology: v5e:2x2
jax: 0.10.0
libtpu: 0.0.40
codegen_flags: <defaults>
</compile_context>

<pallas_src>
import functools

import jax
import jax.numpy as jnp
from jax.experimental import pallas as pl
from jax.experimental.pallas import tpu as pltpu


_LANE = 128
_MAX_WIDTH = 32768                      # lane-dense output width: biggest lever
_SINGLE_BLOCK_BYTES = 2 * 1024 * 1024   # <= this: one VMEM block, no grid
_MIN_STEPS = 4                          # > this: force a pipelined grid


def _make_tanh_kernel(compute_dtype):
    """Elementwise tanh kernel; optional widening (v5e bf16 / integer inputs)."""
    def kernel(x_ref, o_ref):
        x = x_ref[...]
        if compute_dtype is not None and x.dtype != compute_dtype:
            x = x.astype(compute_dtype)
        o_ref[...] = jnp.tanh(x).astype(o_ref.dtype)
    return kernel


@functools.lru_cache(maxsize=1)
def _hw_profile():
    """Best-effort chip detection -> (tile_bytes, vmem_limit_bytes, is_v5e, is_v7)."""
    kind = ""
    try:
        kind = jax.devices()[0].device_kind.lower()
    except Exception:
        pass
    vmem_cap = None
    try:
        vmem_cap = int(pltpu.get_tpu_info().vmem_capacity_bytes)
    except Exception:
        pass
    is_v5e = ("v5 lite" in kind) or ("v5e" in kind) or ("v5lite" in kind)
    is_v7 = "v7" in kind
    small_vmem = is_v7 or (vmem_cap is not None and vmem_cap <= 64 * 1024 * 1024)
    if small_vmem:
        # v7x: 64 MiB physical VMEM / 32 MiB scoped default. 4x tile < 28 MiB.
        return 6 * 1024 * 1024, 28 * 1024 * 1024, is_v5e, is_v7
    # v5e / v6e: 128 MiB physical VMEM; raise the scoped limit for big tiles.
    return 12 * 1024 * 1024, 64 * 1024 * 1024, is_v5e, is_v7


def _choose_slab(total: int, row_align: int):
    """Pick a lane-dense (rows, width) factorization of `total`."""
    width = _LANE
    while (width * 2 <= _MAX_WIDTH
           and total % (width * 2) == 0
           and (total // (width * 2)) % row_align == 0):
        width *= 2
    return total // width, width


def tanh_pallas(x: jax.Array) -> jax.Array:
    """tanh(x) for any shape; the following Identity is a no-op."""
    orig_shape = x.shape
    dtype = x.dtype
    total = int(x.size)
    if total == 0:
        return x

    itemsize = jnp.dtype(dtype).itemsize
    tile_bytes, vmem_limit, is_v5e, is_v7 = _hw_profile()

    # Stay in the native float dtype on v6e/v7x (bf16 VPU/EUP); widen to f32
    # only on v5e for sub-32-bit floats, or for non-float inputs.
    if jnp.issubdtype(dtype, jnp.floating):
        compute_dtype = jnp.float32 if (is_v5e and dtype != jnp.float32) else None
    else:
        compute_dtype = jnp.float32
    kernel = _make_tanh_kernel(compute_dtype)

    # (row_align, 128) packing: f32 -> (8,128), bf16 -> (16,128), int8 -> (32,128).
    row_align = max(8, 32 // itemsize)

    if total % _LANE == 0:
        padded_total, pad = total, 0
    else:
        chunk = row_align * _LANE
        padded_total = -(-total // chunk) * chunk
        pad = padded_total - total

    rows, width = _choose_slab(padded_total, row_align)

    if pad:
        x2d = jnp.pad(jnp.reshape(x, (total,)), (0, pad)).reshape(rows, width)
    else:
        x2d = jnp.reshape(x, (rows, width))   # contiguous -> metadata-only

    slab_bytes = rows * width * itemsize
    out_shape = jax.ShapeDtypeStruct((rows, width), dtype)
    cost = pl.CostEstimate(flops=total, transcendentals=total,
                           bytes_accessed=2 * total * itemsize)

    if slab_bytes <= _SINGLE_BLOCK_BYTES:
        # Small input: one whole-array VMEM block, no grid/pipeline machinery.
        out2d = pl.pallas_call(
            kernel,
            out_shape=out_shape,
            in_specs=[pl.BlockSpec(memory_space=pltpu.MemorySpace.VMEM)],
            out_specs=pl.BlockSpec(memory_space=pltpu.MemorySpace.VMEM),
            cost_estimate=cost,
        )(x2d)
    else:
        # Large input: pipelined 1-D grid over row tiles.
        rows_budget = max(row_align,
                          (tile_bytes // (width * itemsize)) // row_align * row_align)
        # Guarantee at least ~_MIN_STEPS steps so DMA overlaps compute, even if
        # the whole slab would fit a single budget-sized tile.
        rows_for_steps = -(-rows // _MIN_STEPS)
        rows_for_steps = max(row_align, -(-rows_for_steps // row_align) * row_align)
        tile_rows = min(rows, rows_budget, rows_for_steps)
        # Prefer a tile_rows that divides rows (no ragged/masked last block),
        # but only if it does not shrink the tile by more than 2x.
        if rows % tile_rows:
            t = tile_rows - row_align
            while t * 2 > tile_rows:
                if rows % t == 0:
                    tile_rows = t
                    break
                t -= row_align
        num_blocks = -(-rows // tile_rows)

        if is_v7:
            # Split the grid across v7x's two TensorCores.
            semantics = (getattr(pltpu, "CORE_PARALLEL", pltpu.PARALLEL),)
        else:
            semantics = (pltpu.PARALLEL,)

        out2d = pl.pallas_call(
            kernel,
            out_shape=out_shape,
            grid=(num_blocks,),
            in_specs=[pl.BlockSpec((tile_rows, width), lambda i: (i, 0))],
            out_specs=pl.BlockSpec((tile_rows, width), lambda i: (i, 0)),
            compiler_params=pltpu.CompilerParams(
                dimension_semantics=semantics,
                vmem_limit_bytes=vmem_limit),
            cost_estimate=cost,
        )(x2d)

    if pad:
        return jnp.reshape(jnp.reshape(out2d, (padded_total,))[:total], orig_shape)
    return jnp.reshape(out2d, orig_shape)


class ModelTanh:
    """JAX/Pallas equivalent of the PyTorch ModelTanh module."""

    def __init__(self):
        pass  # torch.nn.Identity() has no parameters

    def __call__(self, x):
        v1 = tanh_pallas(x)
        v2 = v1  # Identity (no-op)
        return v2


if __name__ == "__main__":
    key = jax.random.PRNGKey(0)
    x = jax.random.normal(key, (2, 4, 16, 16), dtype=jnp.float32)  # NCHW

    model = ModelTanh()
    out = jax.block_until_ready(model(x))

    # Sanity check against plain JAX reference (EUP tanh is approximate).
    ref = jnp.tanh(x)
    assert out.shape == x.shape and out.dtype == x.dtype
    assert jnp.allclose(out, ref, atol=1e-5, rtol=1e-5)

    print("KERNEL_OK")
</pallas_src>

<mosaic_0001>
module attributes {stable_mosaic.version = 11 : i64} {
  func.func @kernel(%arg0: memref<8x256xf32, #tpu.memory_space<vmem>>, %arg1: memref<8x256xf32, #tpu.memory_space<vmem>>) attributes {dimension_semantics = [], scalar_prefetch = 0 : i64, scratch_operands = 0 : i64, tpu.core_type = #tpu.core_type<tc>} {
    %c0 = arith.constant 0 : index
    %c0_0 = arith.constant 0 : index
    %0 = vector.load %arg0[%c0, %c0_0] : memref<8x256xf32, #tpu.memory_space<vmem>>, vector<8x256xf32>
    %1 = math.tanh %0 : vector<8x256xf32>
    %c0_1 = arith.constant 0 : index
    %c0_2 = arith.constant 0 : index
    %2 = vector.load %arg1[%c0_1, %c0_2] : memref<8x256xf32, #tpu.memory_space<vmem>>, vector<8x256xf32>
    tpu.vector_store %arg1[%c0_1, %c0_2], %1 {strides = array<i32>} : memref<8x256xf32, #tpu.memory_space<vmem>>, vector<8x256xf32>,
    return
  }
}

</mosaic_0001>

<llo_original>
// kernel: tpu_custom_call.1
$region0: #{tpu_custom_call.1}
  #allocation0 [shape = 'u32[]', space=smem, size = 0x4, offset = 0x4, fixed_abs, tag = 'smem constant byte address 0x4 - core index']
  #allocation1 [shape = 'u32[72,128]{1,0:T(1,128)}', space=vmem, size = 0x9000, scoped, tag = 'internal scratch']
  %s0 = inlined_call_operand.hbm [shape: f32[8,256], index: 0, kind: input, shape index: {}]
  %s1 = inlined_call_operand.hbm [shape: f32[8,256], index: 1, kind: output, shape index: {}]
  %s2 = sld [smem:[#allocation0]]
  $region18: #{tpu_custom_call.1} parent=0
    _
  %s4 = ssub.s32 1, %s2
  %s5 = scalar_select 0, %s4, %s2
  $region1: #{tpu_custom_call.1} parent=0
    #allocation2 [shape = 'u8[8192]{0}', space=vmem, size = 0x2000, scoped, tag = 'input window, operand 0, single buffered']
    #allocation3 [shape = 's32[1]{0}', space=sflag, size = 0x4, scoped, tag = 'scoped memory for tpu_custom_call.1']
    #allocation4 [shape = 's32[1]{0}', space=sflag, size = 0x4, scoped, tag = 'scoped memory for tpu_custom_call.1']
    #allocation5 [shape = 'u8[8192]{0}', space=vmem, size = 0x2000, scoped, tag = 'output window, operand 0, single buffered']
    %6 = vsyncpa [#allocation3], 0
    %7 = vsyncpa [#allocation4], 0
    // Predicated region
    $region2: #{tpu_custom_call.1} parent=1 // pred_check
      _
    $region3: #{tpu_custom_call.1} parent=1 // pred_check_branch
      %9 = sbr.rel (0) target = $region5
    $region4: #{tpu_custom_call.1} parent=1 // pred_region
      %11 = vsyncadd [#allocation3], 0
      %s13 = sshll.u32 %s0, 4
      %s14 = int_to_ptr.hbm [resolvable:$true] %s13
      %s15 = sshll.u32 [#allocation2], 4
      %s16 = int_to_ptr.vmem [resolvable:$true] %s15
      %18 = dma.hbm_to_vmem [thread:$0]  %s14, 256, %s16, [#allocation3]
    $region5: #{tpu_custom_call.1} parent=1 // pred_fallthru
      _
    // Predicated region
    $region6: #{tpu_custom_call.1} parent=1 // pred_check
      _
    $region7: #{tpu_custom_call.1} parent=1 // pred_check_branch
      %20 = sbr.rel (0) target = $region9
    $region8: #{tpu_custom_call.1} parent=1 // pred_region
      %22 = dma.done [#allocation3], 256
    $region9: #{tpu_custom_call.1} parent=1 // pred_fallthru
      _
    %v23 = vld [vmem:[#allocation2] sm:$0xff]
    %v24 = vld [vmem:[#allocation2 + $0x8] sm:$0xff]
    %v25 = vtanh.pop %v23
    %v26 = vtanh.pop %v24
    %27 = vst [vmem:[#allocation5] sm:$0xff] %v25
    %28 = vst [vmem:[#allocation5 + $0x8] sm:$0xff] %v26
    // Predicated region
    $region10: #{tpu_custom_call.1} parent=1 // pred_check
      _
    $region11: #{tpu_custom_call.1} parent=1 // pred_check_branch
      %30 = sbr.rel (0) target = $region13
    $region12: #{tpu_custom_call.1} parent=1 // pred_region
      %32 = vsyncadd [#allocation4], 0
      %s34 = sshll.u32 [#allocation5], 4
      %s35 = int_to_ptr.vmem [resolvable:$true] %s34
      %s36 = sshll.u32 %s1, 4
      %s37 = int_to_ptr.hbm [resolvable:$true] %s36
      %39 = dma.vmem_to_hbm [thread:$0]  %s35, 256, %s37, [#allocation4]
    $region13: #{tpu_custom_call.1} parent=1 // pred_fallthru
      _
    // Predicated region
    $region14: #{tpu_custom_call.1} parent=1 // pred_check
      _
    $region15: #{tpu_custom_call.1} parent=1 // pred_check_branch
      %41 = sbr.rel (0) target = $region17
    $region16: #{tpu_custom_call.1} parent=1 // pred_region
      %43 = dma.done [#allocation4], 256
    $region17: #{tpu_custom_call.1} parent=1 // pred_fallthru
      _
    %44 = vsyncpa [#allocation3], 1
    %45 = vsyncpa [#allocation4], 1

</llo_original>
